<compile_context>
chip_gen: v6e
topology: v6e:2x2x1
jax: 0.10.0
libtpu: 0.0.40
codegen_flags: <defaults>
</compile_context>

<pallas_src>
import functools

import jax
import jax.numpy as jnp
from jax.experimental import pallas as pl
from jax.experimental.pallas import tpu as pltpu


def _round_up(x, n):
    return (x + n - 1) // n * n


def _cdiv(a, b):
    return (a + b - 1) // b


def _conv_bn_prelu_kernel(a_ref, w_ref, shift_ref, alpha_ref, o_ref):
    """Fused im2col-matmul (BN scale pre-folded) + BN shift + PReLU.

    a_ref:     (TM, K_pad)     bf16 im2col patch tile (streamed)
    w_ref:     (K_pad, C_pad)  bf16 conv weight with BN scale folded in (resident)
    shift_ref: (1, C_pad)      f32  beta - running_mean * scale (resident)
    alpha_ref: (1, C_pad)      f32  PReLU per-channel slope (resident)
    o_ref:     (TM, C_pad)     bf16 output tile
    """
    y = jnp.dot(a_ref[...], w_ref[...], preferred_element_type=jnp.float32)
    y = y + shift_ref[...]                               # BatchNorm (eval, folded)
    y = y * jnp.where(y >= 0.0, 1.0, alpha_ref[...])     # PReLU (per-channel alpha)
    o_ref[...] = y.astype(o_ref.dtype)


def _im2col_nhwc_bf16(x, kernel, stride, padding):
    """x: (N, C, H, W) f32 -> bf16 patches (N*OH*OW, KH*KW*C) in (kh, kw, c)-minor
    order, plus (N, OH, OW).  One NHWC transpose + one bf16 cast, no f32 blow-up."""
    n, c, h, w = x.shape
    kh = kw = kernel
    x_nhwc = jnp.transpose(x, (0, 2, 3, 1)).astype(jnp.bfloat16)      # (N, H, W, C)
    if padding > 0:
        x_nhwc = jnp.pad(
            x_nhwc, ((0, 0), (padding, padding), (padding, padding), (0, 0)))
        h, w = h + 2 * padding, w + 2 * padding
    oh = (h - kh) // stride + 1
    ow = (w - kw) // stride + 1
    cols = []
    for i in range(kh):
        for j in range(kw):
            cols.append(x_nhwc[:, i:i + stride * oh:stride,
                               j:j + stride * ow:stride, :])          # (N, OH, OW, C)
    patches = jnp.concatenate(cols, axis=-1)                          # (N, OH, OW, KH*KW*C)
    patches = patches.reshape(n * oh * ow, kh * kw * c)
    return patches, (n, oh, ow)


@functools.partial(jax.jit,
                   static_argnames=("kernel", "stride", "padding", "eps"))
def conv_block_forward(x, conv_w, bn_gamma, bn_beta, bn_mean, bn_var,
                       prelu_alpha, *, kernel=3, stride=1, padding=0, eps=1e-5):
    """Forward of Conv_block. x is NCHW f32, conv_w is (Cout, Cin, KH, KW).

    Returns NCHW bf16 (kernel output is bf16; accumulation/epilogue are f32)."""
    out_c, in_c = conv_w.shape[0], conv_w.shape[1]

    patches, (n, oh, ow) = _im2col_nhwc_bf16(x, kernel, stride, padding)  # (M, K) bf16
    m, k = patches.shape

    # ---- lane/sublane friendly padded sizes --------------------------------
    k_pad = _round_up(k, 128)                              # matmul K -> lane-dense
    c_mult = 256 if out_c > 128 else 128                   # fill 256-wide MXU (v6e/v7x)
    c_pad = _round_up(out_c, c_mult)

    # tm: <=1024 rows, >=4 tiles (keeps both v7x TCs busy), minimal m_pad waste.
    n_tiles = max(4, _cdiv(m, 1024))
    tm = max(8, _round_up(_cdiv(m, n_tiles), 8))
    m_pad = _round_up(m, tm)

    patches_p = jnp.pad(patches, ((0, m_pad - m), (0, k_pad - k)))     # bf16, one pass

    # ---- fold BatchNorm (inference) scale into the conv weights ------------
    scale = bn_gamma / jnp.sqrt(bn_var + eps)                          # (Cout,)
    shift = bn_beta - bn_mean * scale                                  # (Cout,)
    # (Cout, Cin, KH, KW) -> (KH, KW, Cin, Cout) -> (K, Cout): matches the
    # (kh, kw, c)-minor im2col ordering.
    w2d = conv_w.transpose(2, 3, 1, 0).reshape(k, out_c) * scale[None, :]
    w_p = jnp.pad(
        w2d, ((0, k_pad - k), (0, c_pad - out_c))).astype(jnp.bfloat16)
    shift_p = jnp.pad(shift, (0, c_pad - out_c)).reshape(1, c_pad).astype(jnp.float32)
    alpha_p = jnp.pad(prelu_alpha, (0, c_pad - out_c)).reshape(1, c_pad)
    alpha_p = alpha_p.astype(jnp.float32)

    # ---- VMEM budget (bytes), computed from the actual tiles ---------------
    # Budget as if everything were double-buffered, so the limit stays safe
    # even if the Buffered(1) hint on the resident operands is not honored.
    vmem_needed = (2 * tm * k_pad * 2          # patch tiles, bf16
                   + 2 * k_pad * c_pad * 2     # weights, bf16
                   + 2 * 2 * 8 * c_pad * 4     # shift + alpha, f32 (sublane-padded)
                   + 2 * tm * c_pad * 2)       # output tiles, bf16
    vmem_limit = int(min(max(vmem_needed + (4 << 20), 16 << 20), 64 << 20))

    resident = functools.partial(pl.BlockSpec, pipeline_mode=pl.Buffered(1))

    grid = (m_pad // tm,)
    out2d = pl.pallas_call(
        _conv_bn_prelu_kernel,
        out_shape=jax.ShapeDtypeStruct((m_pad, c_pad), jnp.bfloat16),
        grid_spec=pltpu.PrefetchScalarGridSpec(
            num_scalar_prefetch=0,
            grid=grid,
            in_specs=[
                pl.BlockSpec((tm, k_pad), lambda i: (i, 0)),      # patches: streamed
                resident((k_pad, c_pad), lambda i: (0, 0)),       # weights: resident
                resident((1, c_pad), lambda i: (0, 0)),           # shift:   resident
                resident((1, c_pad), lambda i: (0, 0)),           # alpha:   resident
            ],
            out_specs=pl.BlockSpec((tm, c_pad), lambda i: (i, 0)),
        ),
        compiler_params=pltpu.CompilerParams(
            dimension_semantics=("parallel",),        # shard M across TCs (v7x)
            vmem_limit_bytes=vmem_limit,
        ),
    )(patches_p, w_p, shift_p, alpha_p)

    # Un-pad (bf16), then back to the module's NCHW output contract.
    # TODO(synk): skip this transpose when the consumer accepts NHWC.
    out = out2d[:m, :out_c].reshape(n, oh, ow, out_c)
    return out.transpose(0, 3, 1, 2)


if __name__ == "__main__":
    key = jax.random.PRNGKey(0)
    k_x, k_w = jax.random.split(key)

    # Small shapes consistent with the module: in_c=4, out_c=8, kernel=3,
    # stride=1, padding=0, input (2, 4, 16, 16) -> output (2, 8, 14, 14).
    in_c, out_c, kernel, stride, padding = 4, 8, 3, 1, 0
    eps = 1e-5
    x = jax.random.normal(k_x, (2, in_c, 16, 16), dtype=jnp.float32)

    # Deterministic parameter init (synthetic; matches PyTorch init shapes).
    fan_in = in_c * kernel * kernel
    conv_w = jax.random.normal(k_w, (out_c, in_c, kernel, kernel),
                               dtype=jnp.float32) * (1.0 / fan_in) ** 0.5
    bn_gamma = jnp.ones((out_c,), jnp.float32)            # BatchNorm2d weight
    bn_beta = jnp.zeros((out_c,), jnp.float32)            # BatchNorm2d bias
    bn_mean = jnp.zeros((out_c,), jnp.float32)            # running_mean
    bn_var = jnp.ones((out_c,), jnp.float32)              # running_var
    prelu_alpha = jnp.full((out_c,), 0.25, jnp.float32)   # PReLU default init

    out = conv_block_forward(x, conv_w, bn_gamma, bn_beta, bn_mean, bn_var,
                             prelu_alpha, kernel=kernel, stride=stride,
                             padding=padding, eps=eps)
    jax.block_until_ready(out)
    assert out.shape == (2, out_c, 14, 14), out.shape

    # Numeric sanity check against a pure-JAX f32 reference (bf16 matmul +
    # bf16 output tolerance).
    ref = jax.lax.conv_general_dilated(
        x, conv_w, window_strides=(stride, stride),
        padding=[(padding, padding), (padding, padding)],
        dimension_numbers=("NCHW", "OIHW", "NCHW"))
    r_scale = bn_gamma / jnp.sqrt(bn_var + eps)
    ref = (ref * r_scale[None, :, None, None]
           + (bn_beta - bn_mean * r_scale)[None, :, None, None])
    ref = jnp.where(ref >= 0, ref, prelu_alpha[None, :, None, None] * ref)
    max_err = float(jnp.max(jnp.abs(out.astype(jnp.float32) - ref)))
    assert max_err < 1e-1, max_err

    print("KERNEL_OK")
</pallas_src>

<mosaic_0001>
module attributes {stable_mosaic.version = 11 : i64} {
  func.func @_conv_bn_prelu_kernel(%arg0: i32, %arg1: memref<104x128xbf16, #tpu.memory_space<vmem>>, %arg2: memref<128x128xbf16, #tpu.memory_space<vmem>>, %arg3: memref<1x128xf32, #tpu.memory_space<vmem>>, %arg4: memref<1x128xf32, #tpu.memory_space<vmem>>, %arg5: memref<104x128xbf16, #tpu.memory_space<vmem>>) attributes {dimension_semantics = [#tpu.dimension_semantics<parallel>], iteration_bounds = array<i64: 4>, scalar_prefetch = 0 : i64, scratch_operands = 0 : i64, tpu.core_type = #tpu.core_type<tc>, window_params = [{transform_indices = @transform_0, window_bounds = array<i64: 104, 128>}, {pipeline_mode = #tpu.pipeline_mode<synchronous>, transform_indices = @transform_1, window_bounds = array<i64: 128, 128>}, {pipeline_mode = #tpu.pipeline_mode<synchronous>, transform_indices = @transform_2, window_bounds = array<i64: 1, 128>}, {pipeline_mode = #tpu.pipeline_mode<synchronous>, transform_indices = @transform_3, window_bounds = array<i64: 1, 128>}, {transform_indices = @transform_4, window_bounds = array<i64: 104, 128>}]} {
    %c0 = arith.constant 0 : index
    %c0_0 = arith.constant 0 : index
    %0 = vector.load %arg1[%c0, %c0_0] : memref<104x128xbf16, #tpu.memory_space<vmem>>, vector<104x128xbf16>
    %c0_1 = arith.constant 0 : index
    %c0_2 = arith.constant 0 : index
    %1 = vector.load %arg2[%c0_1, %c0_2] : memref<128x128xbf16, #tpu.memory_space<vmem>>, vector<128x128xbf16>
    %cst = arith.constant dense<0.000000e+00> : vector<104x128xf32>
    %2 = tpu.matmul %0, %1, %cst {dimension_numbers = #tpu.dot_dimension_numbers<[1], [0], [0], [1], [0, 0, 1, 1], [], []>} : vector<104x128xbf16>, vector<128x128xbf16>, vector<104x128xf32> -> vector<104x128xf32>
    %c0_3 = arith.constant 0 : index
    %c0_4 = arith.constant 0 : index
    %3 = vector.load %arg3[%c0_3, %c0_4] : memref<1x128xf32, #tpu.memory_space<vmem>>, vector<1x128xf32>
    %4 = vector.broadcast %3 : vector<1x128xf32> to vector<104x128xf32>
    %5 = arith.addf %2, %4 : vector<104x128xf32>
    %cst_5 = arith.constant 0.000000e+00 : f32
    %6 = vector.broadcast %cst_5 : f32 to vector<104x128xf32>
    %7 = arith.cmpf oge, %5, %6 : vector<104x128xf32>
    %c0_6 = arith.constant 0 : index
    %c0_7 = arith.constant 0 : index
    %8 = vector.load %arg4[%c0_6, %c0_7] : memref<1x128xf32, #tpu.memory_space<vmem>>, vector<1x128xf32>
    %cst_8 = arith.constant 1.000000e+00 : f32
    %9 = vector.broadcast %cst_8 : f32 to vector<104x128xf32>
    %10 = vector.shape_cast %8 : vector<1x128xf32> to vector<1x128xf32>
    %11 = vector.broadcast %10 : vector<1x128xf32> to vector<104x128xf32>
    %12 = arith.select %7, %9, %11 : vector<104x128xi1>, vector<104x128xf32>
    %13 = arith.mulf %5, %12 : vector<104x128xf32>
    %14 = arith.truncf %13 : vector<104x128xf32> to vector<104x128xbf16>
    %c0_9 = arith.constant 0 : index
    %c0_10 = arith.constant 0 : index
    %15 = vector.load %arg5[%c0_9, %c0_10] : memref<104x128xbf16, #tpu.memory_space<vmem>>, vector<104x128xbf16>
    tpu.vector_store %arg5[%c0_9, %c0_10], %14 {strides = array<i32>} : memref<104x128xbf16, #tpu.memory_space<vmem>>, vector<104x128xbf16>,
    return
  }
  func.func @transform_0(%arg0: i32) -> (i32, i32) {
    %c0_i32 = arith.constant 0 : i32
    %c0_i32_0 = arith.constant 0 : i32
    return %arg0, %c0_i32 : i32, i32
  }
  func.func @transform_1(%arg0: i32) -> (i32, i32) {
    %c0_i32 = arith.constant 0 : i32
    %c0_i32_0 = arith.constant 0 : i32
    %c0_i32_1 = arith.constant 0 : i32
    return %c0_i32, %c0_i32_0 : i32, i32
  }
  func.func @transform_2(%arg0: i32) -> (i32, i32) {
    %c0_i32 = arith.constant 0 : i32
    %c0_i32_0 = arith.constant 0 : i32
    %c0_i32_1 = arith.constant 0 : i32
    return %c0_i32, %c0_i32_0 : i32, i32
  }
  func.func @transform_3(%arg0: i32) -> (i32, i32) {
    %c0_i32 = arith.constant 0 : i32
    %c0_i32_0 = arith.constant 0 : i32
    %c0_i32_1 = arith.constant 0 : i32
    return %c0_i32, %c0_i32_0 : i32, i32
  }
  func.func @transform_4(%arg0: i32) -> (i32, i32) {
    %c0_i32 = arith.constant 0 : i32
    %c0_i32_0 = arith.constant 0 : i32
    return %arg0, %c0_i32 : i32, i32
  }
}

</mosaic_0001>

<llo_original>
// kernel: conv_block_forward.1
$region0: #{conv_block_forward.1}
  #allocation0 [shape = 'u32[]', space=smem, size = 0x4, offset = 0x4, fixed_abs, tag = 'smem constant byte address 0x4 - core index']
  #allocation1 [shape = 'u32[144,128]{1,0:T(1,128)}', space=vmem, size = 0x12000, scoped, tag = 'internal scratch']
  %s0 = inlined_call_operand.vmem [shape: bf16[416,128], index: 0, kind: input, shape index: {}]
  %s1 = inlined_call_operand.vmem [shape: bf16[128,128], index: 1, kind: input, shape index: {}]
  %s2 = inlined_call_operand.vmem [shape: f32[1,128], index: 2, kind: input, shape index: {}]
  %s3 = inlined_call_operand.vmem [shape: f32[1,128], index: 3, kind: input, shape index: {}]
  %s4 = inlined_call_operand.vmem [shape: bf16[416,128], index: 4, kind: output, shape index: {}]
  %s5 = sld [smem:[#allocation0]]
  $region49: #{conv_block_forward.1} parent=0
    _
  %s7 = ssub.s32 1, %s5
  %s8 = scalar_select 0, %s7, %s5
  loop: start=0, step=1, limit=6
  $region2: #{conv_block_forward.1} parent=0 // loop_pre_header
    _
  $region3: #{conv_block_forward.1} parent=0 // loop_header
    %s10 = sphi 0, %s14
    %p11 = scmp.ge.s32.totalorder %s10, 6
    %s20 = sphi 0, %s22
    %s23 = sphi 0, %s20
    %s24 = sphi 0, %s23
    %s40 = sphi 0, %s24
    %s44 = sphi 0, %s44
    %s46 = sphi 0, %s44
    %s47 = sphi 0, %s46
    %s61 = sphi 0, %s47
    %s65 = sphi 0, %s65
    %s67 = sphi 0, %s65
    %s68 = sphi 0, %s67
    %s82 = sphi 0, %s68
    %s86 = sphi 0, %s86
    %s88 = sphi 0, %s86
    %s89 = sphi 0, %s88
    %s103 = sphi 0, %s89
    %s109 = sphi 0, %s111
    %s112 = sphi 0, %s109
    %s113 = sphi 0, %s112
    %s129 = sphi 0, %s113
  $region4: #{conv_block_forward.1} parent=0 // loop_header_branch
    %13 = sbr.rel (%p11) target = $region8
  $region5: #{conv_block_forward.1} parent=0 // loop_body
    %s15 = ssub.s32 %s10, 1
    %s16 = ssub.s32 %s10, 2
    %s17 = sadd.s32 %s10, 1
    %s18 = ssub.s32 %s10, %s17
    %p19 = scmp.eq.s32.totalorder %s18, 0
    %s21 = sadd.s32 %s20, 1
    %s22 = scalar_select %p19, %s20, %s21
    %p25 = pneg %p19
    %p26 = scmp.eq.s32.totalorder %s10, 3
    %p27 = por %p25, %p26
    %p28 = scmp.ne.s32.totalorder %s20, %s23
    %p29 = scmp.eq.s32.totalorder %s10, 0
    %p30 = por %p28, %p29
    %p31 = scmp.ne.s32.totalorder %s20, %s23
    %p32 = scmp.eq.s32.totalorder %s15, 3
    %p33 = por %p31, %p32
    %p34 = scmp.ne.s32.totalorder %s23, %s24
    %p35 = scmp.eq.s32.totalorder %s15, 0
    %p36 = por %p34, %p35
    %p37 = scmp.ne.s32.totalorder %s23, %s24
    %p38 = scmp.eq.s32.totalorder %s16, 3
    %p39 = por %p37, %p38
    %p41 = scmp.ne.s32.totalorder %s24, %s40
    %p42 = scmp.eq.s32.totalorder %s16, 0
    %p43 = por %p41, %p42
    %s45 = sadd.s32 %s44, 1
    %p48 = scmp.eq.s32.totalorder %s10, 3
    %p49 = scmp.ne.s32.totalorder %s44, %s46
    %p50 = scmp.eq.s32.totalorder %s10, 0
    %p51 = por %p49, %p50
    %p52 = scmp.ne.s32.totalorder %s44, %s46
    %p53 = scmp.eq.s32.totalorder %s15, 3
    %p54 = por %p52, %p53
    %p55 = scmp.ne.s32.totalorder %s46, %s47
    %p56 = scmp.eq.s32.totalorder %s15, 0
    %p57 = por %p55, %p56
    %p58 = scmp.ne.s32.totalorder %s46, %s47
    %p59 = scmp.eq.s32.totalorder %s16, 3
    %p60 = por %p58, %p59
    %p62 = scmp.ne.s32.totalorder %s47, %s61
    %p63 = scmp.eq.s32.totalorder %s16, 0
    %p64 = por %p62, %p63
    %s66 = sadd.s32 %s65, 1
    %p69 = scmp.eq.s32.totalorder %s10, 3
    %p70 = scmp.ne.s32.totalorder %s65, %s67
    %p71 = scmp.eq.s32.totalorder %s10, 0
    %p72 = por %p70, %p71
    %p73 = scmp.ne.s32.totalorder %s65, %s67
    %p74 = scmp.eq.s32.totalorder %s15, 3
    %p75 = por %p73, %p74
    %p76 = scmp.ne.s32.totalorder %s67, %s68
    %p77 = scmp.eq.s32.totalorder %s15, 0
    %p78 = por %p76, %p77
    %p79 = scmp.ne.s32.totalorder %s67, %s68
    %p80 = scmp.eq.s32.totalorder %s16, 3
    %p81 = por %p79, %p80
    %p83 = scmp.ne.s32.totalorder %s68, %s82
    %p84 = scmp.eq.s32.totalorder %s16, 0
    %p85 = por %p83, %p84
    %s87 = sadd.s32 %s86, 1
    %p90 = scmp.eq.s32.totalorder %s10, 3
    %p91 = scmp.ne.s32.totalorder %s86, %s88
    %p92 = scmp.eq.s32.totalorder %s10, 0
    %p93 = por %p91, %p92
    %p94 = scmp.ne.s32.totalorder %s86, %s88
    %p95 = scmp.eq.s32.totalorder %s15, 3
    %p96 = por %p94, %p95
    %p97 = scmp.ne.s32.totalorder %s88, %s89
    %p98 = scmp.eq.s32.totalorder %s15, 0
    %p99 = por %p97, %p98
    %p100 = scmp.ne.s32.totalorder %s88, %s89
    %p101 = scmp.eq.s32.totalorder %s16, 3
    %p102 = por %p100, %p101
    %p104 = scmp.ne.s32.totalorder %s89, %s103
    %p105 = scmp.eq.s32.totalorder %s16, 0
    %p106 = por %p104, %p105
    %s107 = ssub.s32 %s10, %s17
    %p108 = scmp.eq.s32.totalorder %s107, 0
    %s110 = sadd.s32 %s109, 1
    %s111 = scalar_select %p108, %s109, %s110
    %p114 = pneg %p108
    %p115 = scmp.eq.s32.totalorder %s10, 3
    %p116 = por %p114, %p115
    %p117 = scmp.ne.s32.totalorder %s109, %s112
    %p118 = scmp.eq.s32.totalorder %s10, 0
    %p119 = por %p117, %p118
    %p120 = scmp.ne.s32.totalorder %s109, %s112
    %p121 = scmp.eq.s32.totalorder %s15, 3
    %p122 = por %p120, %p121
    %p123 = scmp.ne.s32.totalorder %s112, %s113
    %p124 = scmp.eq.s32.totalorder %s15, 0
    %p125 = por %p123, %p124
    %p126 = scmp.ne.s32.totalorder %s112, %s113
    %p127 = scmp.eq.s32.totalorder %s16, 3
    %p128 = por %p126, %p127
    %p130 = scmp.ne.s32.totalorder %s113, %s129
    %p131 = scmp.eq.s32.totalorder %s16, 0
    %p132 = por %p130, %p131
    %p133 = scmp.le.s32.totalorder 1, %s10
    %p134 = scmp.lt.s32.totalorder %s10, 5
    %p135 = pnand %p133, %p134
    %p136 = pneg %p135
    // Predicated region
    $region9: #{conv_block_forward.1} parent=5 // pred_check
      _
    $region10: #{conv_block_forward.1} parent=5 // pred_check_branch
      %138 = sbr.rel (%p135) target = $region12
    $region11: #{conv_block_forward.1} parent=5 // pred_region
      %s139 = ssub.s32 %s10, 1
      // Predicated region
      $region13: #{conv_block_forward.1} parent=11 // pred_check
        %p140 = pneg %p57
      $region14: #{conv_block_forward.1} parent=11 // pred_check_branch
        %142 = sbr.rel (%p140) target = $region16
      $region15: #{conv_block_forward.1} parent=11 // pred_region
        _
      $region16: #{conv_block_forward.1} parent=11 // pred_fallthru
        _
      // Predicated region
      $region17: #{conv_block_forward.1} parent=11 // pred_check
        %p143 = pneg %p78
      $region18: #{conv_block_forward.1} parent=11 // pred_check_branch
        %145 = sbr.rel (%p143) target = $region20
      $region19: #{conv_block_forward.1} parent=11 // pred_region
        _
      $region20: #{conv_block_forward.1} parent=11 // pred_fallthru
        _
      // Predicated region
      $region21: #{conv_block_forward.1} parent=11 // pred_check
        %p146 = pneg %p99
      $region22: #{conv_block_forward.1} parent=11 // pred_check_branch
        %148 = sbr.rel (%p146) target = $region24
      $region23: #{conv_block_forward.1} parent=11 // pred_region
        _
      $region24: #{conv_block_forward.1} parent=11 // pred_fallthru
        _
    $region12: #{conv_block_forward.1} parent=5 // pred_fallthru
      _
    %p149 = scmp.lt.s32.totalorder %s10, 4
    // Predicated region
    $region25: #{conv_block_forward.1} parent=5 // pred_check
      %p150 = pneg %p149
    $region26: #{conv_block_forward.1} parent=5 // pred_check_branch
      %152 = sbr.rel (%p150) target = $region28
    $region27: #{conv_block_forward.1} parent=5 // pred_region
      // Predicated region
      $region29: #{conv_block_forward.1} parent=27 // pred_check
        %p153 = pneg %p30
      $region30: #{conv_block_forward.1} parent=27 // pred_check_branch
        %155 = sbr.rel (%p153) target = $region32
      $region31: #{conv_block_forward.1} parent=27 // pred_region
        %s156 = smul.u32 13, %s10
        %p157 = scmp.lt.s32.totalorder %s156, 51
        %s158 = scalar_select %p157, %s156, 51
        %s159 = smul.addr %s158, 4
        %s160 = scalar_lea.vmem %s0, %s159
        %s161 = smul.u32 13, %s10
      $region32: #{conv_block_forward.1} parent=27 // pred_fallthru
        _
    $region28: #{conv_block_forward.1} parent=5 // pred_fallthru
      _
    %p162 = scmp.le.s32.totalorder 1, %s10
    %p163 = scmp.lt.s32.totalorder %s10, 5
    %p164 = pnand %p162, %p163
    %p165 = pneg %p164
    // Predicated region
    $region33: #{conv_block_forward.1} parent=5 // pred_check
      _
    $region34: #{conv_block_forward.1} parent=5 // pred_check_branch
      %167 = sbr.rel (%p164) target = $region36
    $region35: #{conv_block_forward.1} parent=5 // pred_region
      %s168 = ssub.s32 %s10, 1
      %s169 = smul.u32 13, %s15
      %p170 = scmp.lt.s32.totalorder %s169, 51
      %s171 = scalar_select %p170, %s169, 51
      %s172 = smul.addr %s171, 4
      %s173 = scalar_lea.vmem %s0, %s172
      %p174 = pneg %p36
      %p175 = pneg %p33
      %p176 = pneg %p57
      %p177 = pneg %p54
      %p178 = pneg %p78
      %p179 = pneg %p75
      %p180 = pneg %p99
      %p181 = pneg %p96
      %p182 = pneg %p125
      %p183 = pneg %p122
      %s184 = smul.u32 13, %s15
      %p185 = scmp.lt.s32.totalorder %s184, 51
      %s186 = scalar_select %p185, %s184, 51
      %s187 = smul.addr %s186, 4
      %s188 = scalar_lea.vmem %s4, %s187
      %s189 = smul.u32 13, %s15
      %p190 = scmp.lt.s32.totalorder %s189, 51
      %s191 = scalar_select %p190, %s189, 51
      %s192 = smul.addr %s191, 4
      %s193 = scalar_lea.vmem %s0, %s192
      %s194 = smul.u32 13, %s15
      %s195 = smul.u32 13, %s15
      %p196 = scmp.lt.s32.totalorder %s195, 51
      %s197 = scalar_select %p196, %s195, 51
      %s198 = smul.addr %s197, 4
      %s199 = scalar_lea.vmem %s4, %s198
      %s200 = smul.u32 13, %s15
      %v202 = vld [vmem:[%s193] sm:$0xf]
      %v203 = vld [vmem:[%s193 + $0x4] sm:$0xf]
      %v204 = vld [vmem:[%s193 + $0x8] sm:$0xf]
      %v205 = vld [vmem:[%s193 + $0xc] sm:$0xf]
      %v206 = vld [vmem:[%s193 + $0x10] sm:$0xf]
      %v207 = vld [vmem:[%s193 + $0x14] sm:$0xf]
      %v208 = vld [vmem:[%s193 + $0x18] sm:$0xf]
      %v209 = vld [vmem:[%s193 + $0x1c] sm:$0xf]
      %v210 = vld [vmem:[%s193 + $0x20] sm:$0xf]
      %v211 = vld [vmem:[%s193 + $0x24] sm:$0xf]
      %v212 = vld [vmem:[%s193 + $0x28] sm:$0xf]
      %v213 = vld [vmem:[%s193 + $0x2c] sm:$0xf]
      %v214 = vld [vmem:[%s193 + $0x30] sm:$0xf]
      %v215 = vld [vmem:[%s1] sm:$0xf]
      %v216 = vld [vmem:[%s1 + $0x4] sm:$0xf]
      %v217 = vld [vmem:[%s1 + $0x8] sm:$0xf]
      %v218 = vld [vmem:[%s1 + $0xc] sm:$0xf]
      %v219 = vld [vmem:[%s1 + $0x10] sm:$0xf]
      %v220 = vld [vmem:[%s1 + $0x14] sm:$0xf]
      %v221 = vld [vmem:[%s1 + $0x18] sm:$0xf]
      %v222 = vld [vmem:[%s1 + $0x1c] sm:$0xf]
      %v223 = vld [vmem:[%s1 + $0x20] sm:$0xf]
      %v224 = vld [vmem:[%s1 + $0x24] sm:$0xf]
      %v225 = vld [vmem:[%s1 + $0x28] sm:$0xf]
      %v226 = vld [vmem:[%s1 + $0x2c] sm:$0xf]
      %v227 = vld [vmem:[%s1 + $0x30] sm:$0xf]
      %v228 = vld [vmem:[%s1 + $0x34] sm:$0xf]
      %v229 = vld [vmem:[%s1 + $0x38] sm:$0xf]
      %v230 = vld [vmem:[%s1 + $0x3c] sm:$0xf]
      %v231 = vld [vmem:[%s2] sm:$0x1]
      %v233 = vlaneseq
      %v234 = vshrl.u32 %v233, 7
      %v235 = vsub.s32 0, %v234
      %v236 = vrot.slane %v231, %v235
      %v251 = vunpack.c.l.b16 %v202
      %v252 = vunpack.c.l.b16 %v203
      %v253 = vunpack.c.l.b16 %v204
      %v254 = vunpack.c.l.b16 %v205
      %v255 = vunpack.c.l.b16 %v206
      %v256 = vunpack.c.l.b16 %v207
      %v257 = vunpack.c.l.b16 %v208
      %v258 = vunpack.c.l.b16 %v209
      %v259 = vunpack.c.l.b16 %v210
      %v260 = vunpack.c.l.b16 %v211
      %v261 = vunpack.c.l.b16 %v212
      %v262 = vunpack.c.l.b16 %v213
      %v263 = vunpack.c.l.b16 %v214
      %v264 = vpack.c.b16 %v252, %v251
      %v265 = vpack.c.b16 %v254, %v253
      %v266 = vpack.c.b16 %v256, %v255
      %v267 = vpack.c.b16 %v258, %v257
      %v268 = vpack.c.b16 %v260, %v259
      %v269 = vpack.c.b16 %v262, %v261
      %v270 = vpack.c.b16 %v263, %v263
      %v294 = vunpack.c.l.b16 %v215
      %v295 = vunpack.c.l.b16 %v216
      %v296 = vunpack.c.l.b16 %v217
      %v297 = vunpack.c.l.b16 %v218
      %v298 = vunpack.c.l.b16 %v219
      %v299 = vunpack.c.l.b16 %v220
      %v300 = vunpack.c.l.b16 %v221
      %v301 = vunpack.c.l.b16 %v222
      %v302 = vunpack.c.l.b16 %v223
      %v303 = vunpack.c.l.b16 %v224
      %v304 = vunpack.c.l.b16 %v225
      %v305 = vunpack.c.l.b16 %v226
      %v306 = vunpack.c.l.b16 %v227
      %v307 = vunpack.c.l.b16 %v228
      %v308 = vunpack.c.l.b16 %v229
      %v309 = vunpack.c.l.b16 %v230
      %v310 = vpack.c.b16 %v295, %v294
      %v311 = vpack.c.b16 %v297, %v296
      %v312 = vpack.c.b16 %v299, %v298
      %v313 = vpack.c.b16 %v301, %v300
      %v314 = vpack.c.b16 %v303, %v302
      %v315 = vpack.c.b16 %v305, %v304
      %v316 = vpack.c.b16 %v307, %v306
      %v317 = vpack.c.b16 %v309, %v308
      %326 = vmatprep.subr.bf16.mxu0 0
      %327 = vmatpush1.bf16.msra.mxu0 %v317
      %328 = vmatprep.subr.bf16.mxu0 0
      %329 = vmatpush1.bf16.msra.mxu0 %v316
      %330 = vmatprep.subr.bf16.mxu0 0
      %331 = vmatpush1.bf16.msra.mxu0 %v315
      %332 = vmatprep.subr.bf16.mxu0 0
      %333 = vmatpush1.bf16.msra.mxu0 %v314
      %334 = vmatprep.subr.bf16.mxu0 0
      %335 = vmatpush1.bf16.msra.mxu0 %v313
      %336 = vmatprep.subr.bf16.mxu0 0
      %337 = vmatpush1.bf16.msra.mxu0 %v312
      %338 = vmatprep.subr.bf16.mxu0 0
      %339 = vmatpush1.bf16.msra.mxu0 %v311
      %340 = vmatprep.subr.bf16.mxu0 0
      %341 = vmatpush1.bf16.msra.mxu0 %v310
      %342 = vmatprep.subr.bf16.mxu0 0
      %343 = vmatpush2.bf16.msra.mxu0 0
      %344 = vmatprep.subr.bf16.mxu0 0
      %345 = vmatpush2.bf16.msra.mxu0 0
      %346 = vmatprep.subr.bf16.mxu0 0
      %347 = vmatpush2.bf16.msra.mxu0 0
      %348 = vmatprep.subr.bf16.mxu0 0
      %349 = vmatpush2.bf16.msra.mxu0 0
      %350 = vmatprep.subr.bf16.mxu0 0
      %351 = vmatpush2.bf16.msra.mxu0 0
      %352 = vmatprep.subr.bf16.mxu0 0
      %353 = vmatpush2.bf16.msra.mxu0 0
      %354 = vmatprep.subr.bf16.mxu0 0
      %355 = vmatpush2.bf16.msra.mxu0 0
      %356 = vmatprep.subr.bf16.mxu0 0
      %357 = vmatpush2.bf16.msra.mxu0 0
      %358 = vmatprep.mubr.bf16.mxu0 0
      %359 = vmatmul.mubr.bf16.gmra.mxu0 %v264
      %v360 = vpop.f32.mrf.mxu0
      %v361 = vadd.f32 %v236, %v360
      %v362 = vpop.f32.mrf.mxu0
      %v363 = vpop.f32.mrf.mxu0
      %v364 = vadd.f32 %v236, %v363
      %v365 = vpop.f32.mrf.mxu0
      %366 = vmatprep.mubr.bf16.mxu0 0
      %367 = vmatmul.mubr.bf16.gmra.mxu0 %v265
      %v368 = vpop.f32.mrf.mxu0
      %v369 = vadd.f32 %v236, %v368
      %v370 = vpop.f32.mrf.mxu0
      %v371 = vpop.f32.mrf.mxu0
      %v372 = vadd.f32 %v236, %v371
      %v373 = vpop.f32.mrf.mxu0
      %374 = vmatprep.mubr.bf16.mxu0 0
      %375 = vmatmul.mubr.bf16.gmra.mxu0 %v266
      %v376 = vpop.f32.mrf.mxu0
      %v377 = vadd.f32 %v236, %v376
      %v378 = vpop.f32.mrf.mxu0
      %v379 = vpop.f32.mrf.mxu0
      %v380 = vadd.f32 %v236, %v379
      %v381 = vpop.f32.mrf.mxu0
      %382 = vmatprep.mubr.bf16.mxu0 0
      %383 = vmatmul.mubr.bf16.gmra.mxu0 %v267
      %v384 = vpop.f32.mrf.mxu0
      %v385 = vadd.f32 %v236, %v384
      %v386 = vpop.f32.mrf.mxu0
      %v387 = vpop.f32.mrf.mxu0
      %v388 = vadd.f32 %v236, %v387
      %v389 = vpop.f32.mrf.mxu0
      %390 = vmatprep.mubr.bf16.mxu0 0
      %391 = vmatmul.mubr.bf16.gmra.mxu0 %v268
      %v392 = vpop.f32.mrf.mxu0
      %v393 = vadd.f32 %v236, %v392
      %v394 = vpop.f32.mrf.mxu0
      %v395 = vpop.f32.mrf.mxu0
      %v396 = vadd.f32 %v236, %v395
      %v397 = vpop.f32.mrf.mxu0
      %398 = vmatprep.mubr.bf16.mxu0 0
      %399 = vmatmul.mubr.bf16.gmra.mxu0 %v269
      %v400 = vpop.f32.mrf.mxu0
      %v401 = vadd.f32 %v236, %v400
      %v402 = vpop.f32.mrf.mxu0
      %v403 = vpop.f32.mrf.mxu0
      %v404 = vadd.f32 %v236, %v403
      %v405 = vpop.f32.mrf.mxu0
      %406 = vmatprep.mubr.bf16.mxu0 0
      %407 = vmatmul.mubr.bf16.gmra.mxu0 %v270
      %v408 = vpop.f32.mrf.mxu0
      %v409 = vadd.f32 %v236, %v408
      %v410 = vpop.f32.mrf.mxu0
      %v411 = vpop.f32.mrf.mxu0
      %v412 = vpop.f32.mrf.mxu0
      %413 = vdwg.mxu0
      %vm414 = vcmp.ge.f32.partialorder %v361, 0.0
      %vm415 = vcmp.ge.f32.partialorder %v364, 0.0
      %vm416 = vcmp.ge.f32.partialorder %v369, 0.0
      %vm417 = vcmp.ge.f32.partialorder %v372, 0.0
      %vm418 = vcmp.ge.f32.partialorder %v377, 0.0
      %vm419 = vcmp.ge.f32.partialorder %v380, 0.0
      %vm420 = vcmp.ge.f32.partialorder %v385, 0.0
      %vm421 = vcmp.ge.f32.partialorder %v388, 0.0
      %vm422 = vcmp.ge.f32.partialorder %v393, 0.0
      %vm423 = vcmp.ge.f32.partialorder %v396, 0.0
      %vm424 = vcmp.ge.f32.partialorder %v401, 0.0
      %vm425 = vcmp.ge.f32.partialorder %v404, 0.0
      %vm426 = vcmp.ge.f32.partialorder %v409, 0.0
      %v427 = vld [vmem:[%s3] sm:$0x1]
      %v429 = vlaneseq
      %v430 = vshrl.u32 %v429, 7
      %v431 = vsub.s32 0, %v430
      %v432 = vrot.slane %v427, %v431
      %v434 = vsel %vm414, 1.0, %v432
      %v435 = vsel %vm415, 1.0, %v432
      %v436 = vsel %vm416, 1.0, %v432
      %v437 = vsel %vm417, 1.0, %v432
      %v438 = vsel %vm418, 1.0, %v432
      %v439 = vsel %vm419, 1.0, %v432
      %v440 = vsel %vm420, 1.0, %v432
      %v441 = vsel %vm421, 1.0, %v432
      %v442 = vsel %vm422, 1.0, %v432
      %v443 = vsel %vm423, 1.0, %v432
      %v444 = vsel %vm424, 1.0, %v432
      %v445 = vsel %vm425, 1.0, %v432
      %v446 = vsel %vm426, 1.0, %v432
      %v447 = vmul.f32 %v361, %v434
      %v448 = vmul.f32 %v364, %v435
      %v449 = vmul.f32 %v369, %v436
      %v450 = vmul.f32 %v372, %v437
      %v451 = vmul.f32 %v377, %v438
      %v452 = vmul.f32 %v380, %v439
      %v453 = vmul.f32 %v385, %v440
      %v454 = vmul.f32 %v388, %v441
      %v455 = vmul.f32 %v393, %v442
      %v456 = vmul.f32 %v396, %v443
      %v457 = vmul.f32 %v401, %v444
      %v458 = vmul.f32 %v404, %v445
      %v459 = vmul.f32 %v409, %v446
      %v460 = vpack.c.bf16 %v448, %v447
      %v461 = vpack.c.bf16 %v450, %v449
      %v462 = vpack.c.bf16 %v452, %v451
      %v463 = vpack.c.bf16 %v454, %v453
      %v464 = vpack.c.bf16 %v456, %v455
      %v465 = vpack.c.bf16 %v458, %v457
      %v466 = vpack.c.bf16 %v459, %v459
      %v474 = vunpack.c.l.b16 %v460
      %v475 = vunpack.c.h.b16 %v460
      %v476 = vunpack.c.l.b16 %v461
      %v477 = vunpack.c.h.b16 %v461
      %v478 = vunpack.c.l.b16 %v462
      %v479 = vunpack.c.h.b16 %v462
      %v480 = vunpack.c.l.b16 %v463
      %v481 = vunpack.c.h.b16 %v463
      %v482 = vunpack.c.l.b16 %v464
      %v483 = vunpack.c.h.b16 %v464
      %v484 = vunpack.c.l.b16 %v465
      %v485 = vunpack.c.h.b16 %v465
      %v486 = vunpack.c.l.b16 %v466
      %v487 = vpack.c.b16 %v474, %v474
      %v488 = vpack.c.b16 %v475, %v475
      %v489 = vpack.c.b16 %v476, %v476
      %v490 = vpack.c.b16 %v477, %v477
      %v491 = vpack.c.b16 %v478, %v478
      %v492 = vpack.c.b16 %v479, %v479
      %v493 = vpack.c.b16 %v480, %v480
      %v494 = vpack.c.b16 %v481, %v481
      %v495 = vpack.c.b16 %v482, %v482
      %v496 = vpack.c.b16 %v483, %v483
      %v497 = vpack.c.b16 %v484, %v484
      %v498 = vpack.c.b16 %v485, %v485
      %v499 = vpack.c.b16 %v486, %v486
      %513 = vst [vmem:[%s199] sm:$0xf] %v487
      %514 = vst [vmem:[%s199 + $0x4] sm:$0xf] %v488
      %515 = vst [vmem:[%s199 + $0x8] sm:$0xf] %v489
      %516 = vst [vmem:[%s199 + $0xc] sm:$0xf] %v490
      %517 = vst [vmem:[%s199 + $0x10] sm:$0xf] %v491
      %518 = vst [vmem:[%s199 + $0x14] sm:$0xf] %v492
      %519 = vst [vmem:[%s199 + $0x18] sm:$0xf] %v493
      %520 = vst [vmem:[%s199 + $0x1c] sm:$0xf] %v494
      %521 = vst [vmem:[%s199 + $0x20] sm:$0xf] %v495
      %522 = vst [vmem:[%s199 + $0x24] sm:$0xf] %v496
      %523 = vst [vmem:[%s199 + $0x28] sm:$0xf] %v497
      %524 = vst [vmem:[%s199 + $0x2c] sm:$0xf] %v498
      %525 = vst [vmem:[%s199 + $0x30] sm:$0xf] %v499
      %s526 = smul.u32 13, %s15
      %p527 = scmp.lt.s32.totalorder %s526, 51
      %s528 = scalar_select %p527, %s526, 51
      %s529 = smul.addr %s528, 4
      %s530 = scalar_lea.vmem %s4, %s529
      // Predicated region
      $region37: #{conv_block_forward.1} parent=35 // pred_check
        %p531 = pneg %p122
      $region38: #{conv_block_forward.1} parent=35 // pred_check_branch
        %533 = sbr.rel (%p531) target = $region40
      $region39: #{conv_block_forward.1} parent=35 // pred_region
        %s534 = smul.u32 13, %s15
      $region40: #{conv_block_forward.1} parent=35 // pred_fallthru
        _
    $region36: #{conv_block_forward.1} parent=5 // pred_fallthru
      _
    %p535 = scmp.le.s32.totalorder 2, %s10
    // Predicated region
    $region41: #{conv_block_forward.1} parent=5 // pred_check
      %p536 = pneg %p535
    $region42: #{conv_block_forward.1} parent=5 // pred_check_branch
      %538 = sbr.rel (%p536) target = $region44
    $region43: #{conv_block_forward.1} parent=5 // pred_region
      %s539 = ssub.s32 %s10, 2
      // Predicated region
      $region45: #{conv_block_forward.1} parent=43 // pred_check
        %p540 = pneg %p128
      $region46: #{conv_block_forward.1} parent=43 // pred_check_branch
        %542 = sbr.rel (%p540) target = $region48
      $region47: #{conv_block_forward.1} parent=43 // pred_region
        %s543 = smul.u32 13, %s16
        %p544 = scmp.lt.s32.totalorder %s543, 51
        %s545 = scalar_select %p544, %s543, 51
        %s546 = smul.addr %s545, 4
        %s547 = scalar_lea.vmem %s4, %s546
      $region48: #{conv_block_forward.1} parent=43 // pred_fallthru
        _
    $region44: #{conv_block_forward.1} parent=5 // pred_fallthru
      _
  $region6: #{conv_block_forward.1} parent=0 // loop_footer
    %s14 = sadd.s32 1, %s10
  $region7: #{conv_block_forward.1} parent=0 // loop_footer_branch
    %9 = sbr.rel target = $region3
  $region8: #{conv_block_forward.1} parent=0 // loop_exit
    _

</llo_original>
